<compile_context>
chip_gen: v6e
topology: v6e:2x2x1
jax: 0.10.0
libtpu: 0.0.40
codegen_flags: <defaults>
</compile_context>

<pallas_src>
import jax
import jax.numpy as jnp
from jax.experimental import pallas as pl
from jax.experimental.pallas import tpu as pltpu

IN_FEATURES = 28 * 28   # 784
H1, H2 = 1024, 512
OUT_FEATURES = 10
OUT_PAD = 128           # lane-dense output block; sliced back to 10 in the wrapper
TM_MAX = 512            # batch tile cap (fits default scoped VMEM on v5e/v6e/v7x)


def _round_up(x, m):
    return ((x + m - 1) // m) * m


def _pick_tiling(bs):
    """Pad bs to a sublane multiple and pick a batch tile; >=2 grid steps whenever
    possible so the 'parallel' axis shards across both TensorCores on v7x."""
    padded = _round_up(bs, 8)
    if padded <= 8:
        return padded, padded
    tm = min(TM_MAX, _round_up((padded + 1) // 2, 8))
    padded = _round_up(padded, tm)
    return padded, tm


def _mlp_kernel(x_ref, w_ref, b_ref, o_ref):
    # x tile: (tm, 784) f32 -> bf16 on the VPU (hidden under the MXU).
    # W/b are grid-invariant VMEM-resident blocks; single bf16 matmul, f32 accumulate.
    x = x_ref[...].astype(jnp.bfloat16)
    o_ref[...] = (
        jnp.dot(x, w_ref[...], preferred_element_type=jnp.float32) + b_ref[...]
    ).astype(o_ref.dtype)


def prepare_params(params):
    """One-time prep: collapse the 3 linear layers into a single (784, 128-padded)
    bf16 weight and a (1, 128-padded) f32 bias (composition done in f32)."""
    (w1, b1), (w2, b2), (w3, b3) = params
    hi = jax.lax.Precision.HIGHEST
    wc = jnp.dot(jnp.dot(w1.T, w2.T, precision=hi), w3.T, precision=hi)        # (784, 10) f32
    bc = jnp.dot(jnp.dot(b1, w2.T, precision=hi) + b2, w3.T, precision=hi) + b3  # (10,)  f32
    wc_pad = jnp.zeros((IN_FEATURES, OUT_PAD), jnp.bfloat16).at[:, :OUT_FEATURES].set(
        wc.astype(jnp.bfloat16))
    bc_pad = jnp.zeros((1, OUT_PAD), jnp.float32).at[:, :OUT_FEATURES].set(bc)
    return wc_pad, bc_pad


def mlp_forward(xs, prepared):
    """xs: (bs, 1, 28, 28) float32 (NCHW).  Returns (bs, 10) float32."""
    wc, bc = prepared
    bs = xs.shape[0]
    x2d = xs.reshape(bs, -1)                    # (bs, 784) f32; bf16 cast happens in-kernel

    padded_bs, tm = _pick_tiling(bs)
    if padded_bs != bs:
        x2d = jnp.pad(x2d, ((0, padded_bs - bs), (0, 0)))

    cost = pl.CostEstimate(
        flops=2 * padded_bs * IN_FEATURES * OUT_PAD,
        transcendentals=0,
        bytes_accessed=(padded_bs * IN_FEATURES * 4      # x (f32)
                        + wc.size * 2                    # W (bf16)
                        + bc.size * 4                    # b (f32)
                        + padded_bs * OUT_PAD * 4),      # out (f32)
    )

    out = pl.pallas_call(
        _mlp_kernel,
        out_shape=jax.ShapeDtypeStruct((padded_bs, OUT_PAD), jnp.float32),
        grid_spec=pltpu.PrefetchScalarGridSpec(
            num_scalar_prefetch=0,
            grid=(padded_bs // tm,),
            in_specs=[
                pl.BlockSpec((tm, IN_FEATURES), lambda i: (i, 0)),   # pipelined x tiles
                pl.BlockSpec(wc.shape, lambda i: (0, 0)),            # grid-invariant weight
                pl.BlockSpec(bc.shape, lambda i: (0, 0)),            # grid-invariant bias
            ],
            out_specs=pl.BlockSpec((tm, OUT_PAD), lambda i: (i, 0)),
        ),
        compiler_params=pltpu.CompilerParams(dimension_semantics=("parallel",)),
        cost_estimate=cost,
    )(x2d, wc, bc)

    return out[:bs, :OUT_FEATURES]


def init_params(key):
    """Deterministic init mimicking nn.Linear's default U(-1/sqrt(fan_in), +1/sqrt(fan_in))."""
    dims = [(IN_FEATURES, H1), (H1, H2), (H2, OUT_FEATURES)]
    params = []
    for i, (fan_in, fan_out) in enumerate(dims):
        kw, kb = jax.random.split(jax.random.fold_in(key, i))
        bound = 1.0 / (fan_in ** 0.5)
        w = jax.random.uniform(kw, (fan_out, fan_in), jnp.float32, -bound, bound)
        b = jax.random.uniform(kb, (fan_out,), jnp.float32, -bound, bound)
        params.append((w, b))
    return params


if __name__ == "__main__":
    key = jax.random.PRNGKey(0)
    k_x, k_p = jax.random.split(key)

    bs = 2
    xs = jax.random.normal(k_x, (bs, 1, 28, 28), jnp.float32)   # NCHW, MNIST-like
    params = init_params(k_p)

    prepared = prepare_params(params)          # one-time weight collapse / prep
    fwd = jax.jit(mlp_forward)
    out = jax.block_until_ready(fwd(xs, prepared))

    # --- correctness checks --------------------------------------------------
    (w1, b1), (w2, b2), (w3, b3) = params
    xf = xs.reshape(bs, -1)
    hi = jax.lax.Precision.HIGHEST
    h1 = jnp.dot(xf, w1.T, precision=hi) + b1
    h2 = jnp.dot(h1, w2.T, precision=hi) + b2
    ref_f32 = jnp.dot(h2, w3.T, precision=hi) + b3               # layer-wise f32 semantics

    wc, bc = prepared                                             # same math path as kernel
    ref_same = (jnp.dot(xf.astype(jnp.bfloat16), wc,
                        preferred_element_type=jnp.float32) + bc)[:, :OUT_FEATURES]

    assert out.shape == (bs, OUT_FEATURES)
    assert jnp.allclose(out, ref_same, atol=1e-4, rtol=1e-4), "kernel != same-path reference"
    assert jnp.allclose(out, ref_f32, atol=1e-2, rtol=1e-2), "kernel != f32 module semantics"

    print("KERNEL_OK")
</pallas_src>

<mosaic_0001>
module attributes {stable_mosaic.version = 11 : i64} {
  func.func @_mlp_kernel(%arg0: i32, %arg1: memref<8x784xf32, #tpu.memory_space<vmem>>, %arg2: memref<784x128xbf16, #tpu.memory_space<vmem>>, %arg3: memref<1x128xf32, #tpu.memory_space<vmem>>, %arg4: memref<8x128xf32, #tpu.memory_space<vmem>>) attributes {dimension_semantics = [#tpu.dimension_semantics<parallel>], iteration_bounds = array<i64: 1>, scalar_prefetch = 0 : i64, scratch_operands = 0 : i64, tpu.core_type = #tpu.core_type<tc>, window_params = [{transform_indices = @transform_0, window_bounds = array<i64: 8, 784>}, {pipeline_mode = #tpu.pipeline_mode<synchronous>, transform_indices = @transform_1, window_bounds = array<i64: 784, 128>}, {pipeline_mode = #tpu.pipeline_mode<synchronous>, transform_indices = @transform_2, window_bounds = array<i64: 1, 128>}, {transform_indices = @transform_3, window_bounds = array<i64: 8, 128>}]} {
    %c0 = arith.constant 0 : index
    %c0_0 = arith.constant 0 : index
    %0 = vector.load %arg1[%c0, %c0_0] : memref<8x784xf32, #tpu.memory_space<vmem>>, vector<8x784xf32>
    %1 = arith.truncf %0 : vector<8x784xf32> to vector<8x784xbf16>
    %c0_1 = arith.constant 0 : index
    %c0_2 = arith.constant 0 : index
    %2 = vector.load %arg2[%c0_1, %c0_2] : memref<784x128xbf16, #tpu.memory_space<vmem>>, vector<784x128xbf16>
    %cst = arith.constant dense<0.000000e+00> : vector<8x128xf32>
    %3 = tpu.matmul %1, %2, %cst {dimension_numbers = #tpu.dot_dimension_numbers<[1], [0], [0], [1], [0, 0, 1, 1], [], []>} : vector<8x784xbf16>, vector<784x128xbf16>, vector<8x128xf32> -> vector<8x128xf32>
    %c0_3 = arith.constant 0 : index
    %c0_4 = arith.constant 0 : index
    %4 = vector.load %arg3[%c0_3, %c0_4] : memref<1x128xf32, #tpu.memory_space<vmem>>, vector<1x128xf32>
    %5 = vector.broadcast %4 : vector<1x128xf32> to vector<8x128xf32>
    %6 = arith.addf %3, %5 : vector<8x128xf32>
    %c0_5 = arith.constant 0 : index
    %c0_6 = arith.constant 0 : index
    %7 = vector.load %arg4[%c0_5, %c0_6] : memref<8x128xf32, #tpu.memory_space<vmem>>, vector<8x128xf32>
    tpu.vector_store %arg4[%c0_5, %c0_6], %6 {strides = array<i32>} : memref<8x128xf32, #tpu.memory_space<vmem>>, vector<8x128xf32>,
    return
  }
  func.func @transform_0(%arg0: i32) -> (i32, i32) {
    %c0_i32 = arith.constant 0 : i32
    %c0_i32_0 = arith.constant 0 : i32
    return %arg0, %c0_i32 : i32, i32
  }
  func.func @transform_1(%arg0: i32) -> (i32, i32) {
    %c0_i32 = arith.constant 0 : i32
    %c0_i32_0 = arith.constant 0 : i32
    %c0_i32_1 = arith.constant 0 : i32
    return %c0_i32, %c0_i32_0 : i32, i32
  }
  func.func @transform_2(%arg0: i32) -> (i32, i32) {
    %c0_i32 = arith.constant 0 : i32
    %c0_i32_0 = arith.constant 0 : i32
    %c0_i32_1 = arith.constant 0 : i32
    return %c0_i32, %c0_i32_0 : i32, i32
  }
  func.func @transform_3(%arg0: i32) -> (i32, i32) {
    %c0_i32 = arith.constant 0 : i32
    %c0_i32_0 = arith.constant 0 : i32
    return %arg0, %c0_i32 : i32, i32
  }
}

</mosaic_0001>

<llo_original>
// kernel: mlp_forward.1
$region0: #{mlp_forward.1}
  #allocation0 [shape = 'u32[]', space=smem, size = 0x4, offset = 0x4, fixed_abs, tag = 'smem constant byte address 0x4 - core index']
  #allocation1 [shape = 'u32[144,128]{1,0:T(1,128)}', space=vmem, size = 0x12000, scoped, tag = 'internal scratch']
  %s0 = inlined_call_operand.vmem [shape: f32[8,784], index: 0, kind: input, shape index: {}]
  %s1 = inlined_call_operand.hbm [shape: bf16[784,128], index: 1, kind: input, shape index: {}]
  %s2 = inlined_call_operand.vmem [shape: f32[1,128], index: 2, kind: input, shape index: {}]
  %s3 = inlined_call_operand.vmem [shape: f32[8,128], index: 3, kind: output, shape index: {}]
  %s4 = sld [smem:[#allocation0]]
  $region26: #{mlp_forward.1} parent=0
    _
  %s6 = ssub.s32 1, %s4
  %s7 = scalar_select 0, %s6, %s4
  $region1: #{mlp_forward.1} parent=0
    #allocation2 [shape = 'u8[200704]{0}', space=vmem, size = 0x31000, scoped, tag = 'input window, operand 1, single buffered']
    #allocation3 [shape = 's32[1]{0}', space=sflag, size = 0x4, scoped, tag = 'scoped memory for mlp_forward.1']
    %8 = vsyncpa [#allocation3], 0
    // Predicated region
    $region2: #{mlp_forward.1} parent=1 // pred_check
      _
    $region3: #{mlp_forward.1} parent=1 // pred_check_branch
      %10 = sbr.rel (0) target = $region5
    $region4: #{mlp_forward.1} parent=1 // pred_region
      _
    $region5: #{mlp_forward.1} parent=1 // pred_fallthru
      _
    // Predicated region
    $region6: #{mlp_forward.1} parent=1 // pred_check
      _
    $region7: #{mlp_forward.1} parent=1 // pred_check_branch
      %12 = sbr.rel (0) target = $region9
    $region8: #{mlp_forward.1} parent=1 // pred_region
      %s14 = ssub.s32 6272, 6272
      %15 = vsyncadd [#allocation3], %s14
      %s16 = sshll.u32 [#allocation2], 4
      %s17 = int_to_ptr.vmem [resolvable:$true] %s16
      %22 = dma.hbm_to_vmem [thread:$0]  %s1, 6272, %s17, [#allocation3], 64, 64, 4
    $region9: #{mlp_forward.1} parent=1 // pred_fallthru
      _
    // Predicated region
    $region10: #{mlp_forward.1} parent=1 // pred_check
      _
    $region11: #{mlp_forward.1} parent=1 // pred_check_branch
      %24 = sbr.rel (0) target = $region13
    $region12: #{mlp_forward.1} parent=1 // pred_region
      _
    $region13: #{mlp_forward.1} parent=1 // pred_fallthru
      _
    // Predicated region
    $region14: #{mlp_forward.1} parent=1 // pred_check
      _
    $region15: #{mlp_forward.1} parent=1 // pred_check_branch
      %26 = sbr.rel (0) target = $region17
    $region16: #{mlp_forward.1} parent=1 // pred_region
      %27 = dma.done [#allocation3], 6272
    $region17: #{mlp_forward.1} parent=1 // pred_fallthru
      _
    %v29 = vld [vmem:[%s0] sm:$0xff]
    %v30 = vld [vmem:[%s0 + $0x8] sm:$0xff]
    %v31 = vld [vmem:[%s0 + $0x10] sm:$0xff]
    %v32 = vld [vmem:[%s0 + $0x18] sm:$0xff]
    %v33 = vld [vmem:[%s0 + $0x20] sm:$0xff]
    %v34 = vld [vmem:[%s0 + $0x28] sm:$0xff]
    %v35 = vld [vmem:[%s0 + $0x30] sm:$0xff]
    %v36 = vpack.c.bf16 %v29, %v29
    %v37 = vpack.c.bf16 %v30, %v30
    %v38 = vpack.c.bf16 %v31, %v31
    %v39 = vpack.c.bf16 %v32, %v32
    %v40 = vpack.c.bf16 %v33, %v33
    %v41 = vpack.c.bf16 %v34, %v34
    %v42 = vpack.c.bf16 %v35, %v35
    %v43 = vld [vmem:[#allocation2] sm:$0xf]
    %v44 = vld [vmem:[#allocation2 + $0x4] sm:$0xf]
    %v45 = vld [vmem:[#allocation2 + $0x8] sm:$0xf]
    %v46 = vld [vmem:[#allocation2 + $0xc] sm:$0xf]
    %v47 = vld [vmem:[#allocation2 + $0x10] sm:$0xf]
    %v48 = vld [vmem:[#allocation2 + $0x14] sm:$0xf]
    %v49 = vld [vmem:[#allocation2 + $0x18] sm:$0xf]
    %v50 = vld [vmem:[#allocation2 + $0x1c] sm:$0xf]
    %v51 = vld [vmem:[#allocation2 + $0x20] sm:$0xf]
    %v52 = vld [vmem:[#allocation2 + $0x24] sm:$0xf]
    %v53 = vld [vmem:[#allocation2 + $0x28] sm:$0xf]
    %v54 = vld [vmem:[#allocation2 + $0x2c] sm:$0xf]
    %v55 = vld [vmem:[#allocation2 + $0x30] sm:$0xf]
    %v56 = vld [vmem:[#allocation2 + $0x34] sm:$0xf]
    %v57 = vld [vmem:[#allocation2 + $0x38] sm:$0xf]
    %v58 = vld [vmem:[#allocation2 + $0x3c] sm:$0xf]
    %v59 = vld [vmem:[#allocation2 + $0x40] sm:$0xf]
    %v60 = vld [vmem:[#allocation2 + $0x44] sm:$0xf]
    %v61 = vld [vmem:[#allocation2 + $0x48] sm:$0xf]
    %v62 = vld [vmem:[#allocation2 + $0x4c] sm:$0xf]
    %v63 = vld [vmem:[#allocation2 + $0x50] sm:$0xf]
    %v64 = vld [vmem:[#allocation2 + $0x54] sm:$0xf]
    %v65 = vld [vmem:[#allocation2 + $0x58] sm:$0xf]
    %v66 = vld [vmem:[#allocation2 + $0x5c] sm:$0xf]
    %v67 = vld [vmem:[#allocation2 + $0x60] sm:$0xf]
    %v68 = vld [vmem:[#allocation2 + $0x64] sm:$0xf]
    %v69 = vld [vmem:[#allocation2 + $0x68] sm:$0xf]
    %v70 = vld [vmem:[#allocation2 + $0x6c] sm:$0xf]
    %v71 = vld [vmem:[#allocation2 + $0x70] sm:$0xf]
    %v72 = vld [vmem:[#allocation2 + $0x74] sm:$0xf]
    %v73 = vld [vmem:[#allocation2 + $0x78] sm:$0xf]
    %v74 = vld [vmem:[#allocation2 + $0x7c] sm:$0xf]
    %v75 = vld [vmem:[#allocation2 + $0x80] sm:$0xf]
    %v76 = vld [vmem:[#allocation2 + $0x84] sm:$0xf]
    %v77 = vld [vmem:[#allocation2 + $0x88] sm:$0xf]
    %v78 = vld [vmem:[#allocation2 + $0x8c] sm:$0xf]
    %v79 = vld [vmem:[#allocation2 + $0x90] sm:$0xf]
    %v80 = vld [vmem:[#allocation2 + $0x94] sm:$0xf]
    %v81 = vld [vmem:[#allocation2 + $0x98] sm:$0xf]
    %v82 = vld [vmem:[#allocation2 + $0x9c] sm:$0xf]
    %v83 = vld [vmem:[#allocation2 + $0xa0] sm:$0xf]
    %v84 = vld [vmem:[#allocation2 + $0xa4] sm:$0xf]
    %v85 = vld [vmem:[#allocation2 + $0xa8] sm:$0xf]
    %v86 = vld [vmem:[#allocation2 + $0xac] sm:$0xf]
    %v87 = vld [vmem:[#allocation2 + $0xb0] sm:$0xf]
    %v88 = vld [vmem:[#allocation2 + $0xb4] sm:$0xf]
    %v89 = vld [vmem:[#allocation2 + $0xb8] sm:$0xf]
    %v90 = vld [vmem:[#allocation2 + $0xbc] sm:$0xf]
    %v91 = vld [vmem:[#allocation2 + $0xc0] sm:$0xf]
    %v92 = vld [vmem:[#allocation2 + $0xc4] sm:$0xf]
    %v93 = vld [vmem:[#allocation2 + $0xc8] sm:$0xf]
    %v94 = vld [vmem:[#allocation2 + $0xcc] sm:$0xf]
    %v95 = vld [vmem:[#allocation2 + $0xd0] sm:$0xf]
    %v96 = vld [vmem:[#allocation2 + $0xd4] sm:$0xf]
    %v97 = vld [vmem:[#allocation2 + $0xd8] sm:$0xf]
    %v98 = vld [vmem:[#allocation2 + $0xdc] sm:$0xf]
    %v99 = vld [vmem:[#allocation2 + $0xe0] sm:$0xf]
    %v100 = vld [vmem:[#allocation2 + $0xe4] sm:$0xf]
    %v101 = vld [vmem:[#allocation2 + $0xe8] sm:$0xf]
    %v102 = vld [vmem:[#allocation2 + $0xec] sm:$0xf]
    %v103 = vld [vmem:[#allocation2 + $0xf0] sm:$0xf]
    %v104 = vld [vmem:[#allocation2 + $0xf4] sm:$0xf]
    %v105 = vld [vmem:[#allocation2 + $0xf8] sm:$0xf]
    %v106 = vld [vmem:[#allocation2 + $0xfc] sm:$0xf]
    %v107 = vld [vmem:[#allocation2 + $0x100] sm:$0xf]
    %v108 = vld [vmem:[#allocation2 + $0x104] sm:$0xf]
    %v109 = vld [vmem:[#allocation2 + $0x108] sm:$0xf]
    %v110 = vld [vmem:[#allocation2 + $0x10c] sm:$0xf]
    %v111 = vld [vmem:[#allocation2 + $0x110] sm:$0xf]
    %v112 = vld [vmem:[#allocation2 + $0x114] sm:$0xf]
    %v113 = vld [vmem:[#allocation2 + $0x118] sm:$0xf]
    %v114 = vld [vmem:[#allocation2 + $0x11c] sm:$0xf]
    %v115 = vld [vmem:[#allocation2 + $0x120] sm:$0xf]
    %v116 = vld [vmem:[#allocation2 + $0x124] sm:$0xf]
    %v117 = vld [vmem:[#allocation2 + $0x128] sm:$0xf]
    %v118 = vld [vmem:[#allocation2 + $0x12c] sm:$0xf]
    %v119 = vld [vmem:[#allocation2 + $0x130] sm:$0xf]
    %v120 = vld [vmem:[#allocation2 + $0x134] sm:$0xf]
    %v121 = vld [vmem:[#allocation2 + $0x138] sm:$0xf]
    %v122 = vld [vmem:[#allocation2 + $0x13c] sm:$0xf]
    %v123 = vld [vmem:[#allocation2 + $0x140] sm:$0xf]
    %v124 = vld [vmem:[#allocation2 + $0x144] sm:$0xf]
    %v125 = vld [vmem:[#allocation2 + $0x148] sm:$0xf]
    %v126 = vld [vmem:[#allocation2 + $0x14c] sm:$0xf]
    %v127 = vld [vmem:[#allocation2 + $0x150] sm:$0xf]
    %v128 = vld [vmem:[#allocation2 + $0x154] sm:$0xf]
    %v129 = vld [vmem:[#allocation2 + $0x158] sm:$0xf]
    %v130 = vld [vmem:[#allocation2 + $0x15c] sm:$0xf]
    %v131 = vld [vmem:[#allocation2 + $0x160] sm:$0xf]
    %v132 = vld [vmem:[#allocation2 + $0x164] sm:$0xf]
    %v133 = vld [vmem:[#allocation2 + $0x168] sm:$0xf]
    %v134 = vld [vmem:[#allocation2 + $0x16c] sm:$0xf]
    %v135 = vld [vmem:[#allocation2 + $0x170] sm:$0xf]
    %v136 = vld [vmem:[#allocation2 + $0x174] sm:$0xf]
    %v137 = vld [vmem:[#allocation2 + $0x178] sm:$0xf]
    %v138 = vld [vmem:[#allocation2 + $0x17c] sm:$0xf]
    %v139 = vld [vmem:[#allocation2 + $0x180] sm:$0xf]
    %v140 = vld [vmem:[#allocation2 + $0x184] sm:$0xf]
    %v141 = vld [vmem:[%s2] sm:$0x1]
    %v143 = vlaneseq
    %v144 = vshrl.u32 %v143, 7
    %v145 = vsub.s32 0, %v144
    %v146 = vrot.slane %v141, %v145
    %v246 = vunpack.c.l.b16 %v43
    %v247 = vunpack.c.l.b16 %v44
    %v248 = vunpack.c.l.b16 %v45
    %v249 = vunpack.c.l.b16 %v46
    %v250 = vunpack.c.l.b16 %v47
    %v251 = vunpack.c.l.b16 %v48
    %v252 = vunpack.c.l.b16 %v49
    %v253 = vunpack.c.l.b16 %v50
    %v254 = vunpack.c.l.b16 %v51
    %v255 = vunpack.c.l.b16 %v52
    %v256 = vunpack.c.l.b16 %v53
    %v257 = vunpack.c.l.b16 %v54
    %v258 = vunpack.c.l.b16 %v55
    %v259 = vunpack.c.l.b16 %v56
    %v260 = vunpack.c.l.b16 %v57
    %v261 = vunpack.c.l.b16 %v58
    %v262 = vunpack.c.l.b16 %v59
    %v263 = vunpack.c.l.b16 %v60
    %v264 = vunpack.c.l.b16 %v61
    %v265 = vunpack.c.l.b16 %v62
    %v266 = vunpack.c.l.b16 %v63
    %v267 = vunpack.c.l.b16 %v64
    %v268 = vunpack.c.l.b16 %v65
    %v269 = vunpack.c.l.b16 %v66
    %v270 = vunpack.c.l.b16 %v67
    %v271 = vunpack.c.l.b16 %v68
    %v272 = vunpack.c.l.b16 %v69
    %v273 = vunpack.c.l.b16 %v70
    %v274 = vunpack.c.l.b16 %v71
    %v275 = vunpack.c.l.b16 %v72
    %v276 = vunpack.c.l.b16 %v73
    %v277 = vunpack.c.l.b16 %v74
    %v278 = vunpack.c.l.b16 %v75
    %v279 = vunpack.c.l.b16 %v76
    %v280 = vunpack.c.l.b16 %v77
    %v281 = vunpack.c.l.b16 %v78
    %v282 = vunpack.c.l.b16 %v79
    %v283 = vunpack.c.l.b16 %v80
    %v284 = vunpack.c.l.b16 %v81
    %v285 = vunpack.c.l.b16 %v82
    %v286 = vunpack.c.l.b16 %v83
    %v287 = vunpack.c.l.b16 %v84
    %v288 = vunpack.c.l.b16 %v85
    %v289 = vunpack.c.l.b16 %v86
    %v290 = vunpack.c.l.b16 %v87
    %v291 = vunpack.c.l.b16 %v88
    %v292 = vunpack.c.l.b16 %v89
    %v293 = vunpack.c.l.b16 %v90
    %v294 = vunpack.c.l.b16 %v91
    %v295 = vunpack.c.l.b16 %v92
    %v296 = vunpack.c.l.b16 %v93
    %v297 = vunpack.c.l.b16 %v94
    %v298 = vunpack.c.l.b16 %v95
    %v299 = vunpack.c.l.b16 %v96
    %v300 = vunpack.c.l.b16 %v97
    %v301 = vunpack.c.l.b16 %v98
    %v302 = vunpack.c.l.b16 %v99
    %v303 = vunpack.c.l.b16 %v100
    %v304 = vunpack.c.l.b16 %v101
    %v305 = vunpack.c.l.b16 %v102
    %v306 = vunpack.c.l.b16 %v103
    %v307 = vunpack.c.l.b16 %v104
    %v308 = vunpack.c.l.b16 %v105
    %v309 = vunpack.c.l.b16 %v106
    %v310 = vunpack.c.l.b16 %v107
    %v311 = vunpack.c.l.b16 %v108
    %v312 = vunpack.c.l.b16 %v109
    %v313 = vunpack.c.l.b16 %v110
    %v314 = vunpack.c.l.b16 %v111
    %v315 = vunpack.c.l.b16 %v112
    %v316 = vunpack.c.l.b16 %v113
    %v317 = vunpack.c.l.b16 %v114
    %v318 = vunpack.c.l.b16 %v115
    %v319 = vunpack.c.l.b16 %v116
    %v320 = vunpack.c.l.b16 %v117
    %v321 = vunpack.c.l.b16 %v118
    %v322 = vunpack.c.l.b16 %v119
    %v323 = vunpack.c.l.b16 %v120
    %v324 = vunpack.c.l.b16 %v121
    %v325 = vunpack.c.l.b16 %v122
    %v326 = vunpack.c.l.b16 %v123
    %v327 = vunpack.c.l.b16 %v124
    %v328 = vunpack.c.l.b16 %v125
    %v329 = vunpack.c.l.b16 %v126
    %v330 = vunpack.c.l.b16 %v127
    %v331 = vunpack.c.l.b16 %v128
    %v332 = vunpack.c.l.b16 %v129
    %v333 = vunpack.c.l.b16 %v130
    %v334 = vunpack.c.l.b16 %v131
    %v335 = vunpack.c.l.b16 %v132
    %v336 = vunpack.c.l.b16 %v133
    %v337 = vunpack.c.l.b16 %v134
    %v338 = vunpack.c.l.b16 %v135
    %v339 = vunpack.c.l.b16 %v136
    %v340 = vunpack.c.l.b16 %v137
    %v341 = vunpack.c.l.b16 %v138
    %v342 = vunpack.c.l.b16 %v139
    %v343 = vunpack.c.l.b16 %v140
    %v344 = vpack.c.b16 %v247, %v246
    %v345 = vpack.c.b16 %v249, %v248
    %v346 = vpack.c.b16 %v251, %v250
    %v347 = vpack.c.b16 %v253, %v252
    %v348 = vpack.c.b16 %v255, %v254
    %v349 = vpack.c.b16 %v257, %v256
    %v350 = vpack.c.b16 %v259, %v258
    %v351 = vpack.c.b16 %v261, %v260
    %v352 = vpack.c.b16 %v263, %v262
    %v353 = vpack.c.b16 %v265, %v264
    %v354 = vpack.c.b16 %v267, %v266
    %v355 = vpack.c.b16 %v269, %v268
    %v356 = vpack.c.b16 %v271, %v270
    %v357 = vpack.c.b16 %v273, %v272
    %v358 = vpack.c.b16 %v275, %v274
    %v359 = vpack.c.b16 %v277, %v276
    %v360 = vpack.c.b16 %v279, %v278
    %v361 = vpack.c.b16 %v281, %v280
    %v362 = vpack.c.b16 %v283, %v282
    %v363 = vpack.c.b16 %v285, %v284
    %v364 = vpack.c.b16 %v287, %v286
    %v365 = vpack.c.b16 %v289, %v288
    %v366 = vpack.c.b16 %v291, %v290
    %v367 = vpack.c.b16 %v293, %v292
    %v368 = vpack.c.b16 %v295, %v294
    %v369 = vpack.c.b16 %v297, %v296
    %v370 = vpack.c.b16 %v299, %v298
    %v371 = vpack.c.b16 %v301, %v300
    %v372 = vpack.c.b16 %v303, %v302
    %v373 = vpack.c.b16 %v305, %v304
    %v374 = vpack.c.b16 %v307, %v306
    %v375 = vpack.c.b16 %v309, %v308
    %v376 = vpack.c.b16 %v311, %v310
    %v377 = vpack.c.b16 %v313, %v312
    %v378 = vpack.c.b16 %v315, %v314
    %v379 = vpack.c.b16 %v317, %v316
    %v380 = vpack.c.b16 %v319, %v318
    %v381 = vpack.c.b16 %v321, %v320
    %v382 = vpack.c.b16 %v323, %v322
    %v383 = vpack.c.b16 %v325, %v324
    %v384 = vpack.c.b16 %v327, %v326
    %v385 = vpack.c.b16 %v329, %v328
    %v386 = vpack.c.b16 %v331, %v330
    %v387 = vpack.c.b16 %v333, %v332
    %v388 = vpack.c.b16 %v335, %v334
    %v389 = vpack.c.b16 %v337, %v336
    %v390 = vpack.c.b16 %v339, %v338
    %v391 = vpack.c.b16 %v341, %v340
    %v392 = vpack.c.b16 %v343, %v342
    %vm442 = vcmask 130048
    %v444 = vsel %vm442, %v42, 0
    %446 = vmatprep.subr.bf16.mxu0 0
    %447 = vmatpush1.bf16.msra.mxu0 %v351
    %448 = vmatprep.subr.bf16.mxu0 0
    %449 = vmatpush1.bf16.msra.mxu0 %v350
    %450 = vmatprep.subr.bf16.mxu0 0
    %451 = vmatpush1.bf16.msra.mxu0 %v349
    %452 = vmatprep.subr.bf16.mxu0 0
    %453 = vmatpush1.bf16.msra.mxu0 %v348
    %454 = vmatprep.subr.bf16.mxu0 0
    %455 = vmatpush1.bf16.msra.mxu0 %v347
    %456 = vmatprep.subr.bf16.mxu0 0
    %457 = vmatpush1.bf16.msra.mxu0 %v346
    %458 = vmatprep.subr.bf16.mxu0 0
    %459 = vmatpush1.bf16.msra.mxu0 %v345
    %460 = vmatprep.subr.bf16.mxu0 0
    %461 = vmatpush1.bf16.msra.mxu0 %v344
    %462 = vmatprep.subr.bf16.mxu0 0
    %463 = vmatpush2.bf16.msra.mxu0 %v359
    %464 = vmatprep.subr.bf16.mxu0 0
    %465 = vmatpush2.bf16.msra.mxu0 %v358
    %466 = vmatprep.subr.bf16.mxu0 0
    %467 = vmatpush2.bf16.msra.mxu0 %v357
    %468 = vmatprep.subr.bf16.mxu0 0
    %469 = vmatpush2.bf16.msra.mxu0 %v356
    %470 = vmatprep.subr.bf16.mxu0 0
    %471 = vmatpush2.bf16.msra.mxu0 %v355
    %472 = vmatprep.subr.bf16.mxu0 0
    %473 = vmatpush2.bf16.msra.mxu0 %v354
    %474 = vmatprep.subr.bf16.mxu0 0
    %475 = vmatpush2.bf16.msra.mxu0 %v353
    %476 = vmatprep.subr.bf16.mxu0 0
    %477 = vmatpush2.bf16.msra.mxu0 %v352
    %478 = vmatprep.mubr.bf16.mxu0 %v37
    %479 = vmatmul.mubr.bf16.gmra.mxu0 %v36
    %v480 = vpop.f32.mrf.mxu0
    %v481 = vadd.f32 %v146, %v480
    %v482 = vpop.f32.mrf.mxu0
    %v483 = vpop.f32.mrf.mxu0
    %v484 = vpop.f32.mrf.mxu0
    %485 = vdwg.mxu0
    %486 = vmatprep.subr.bf16.mxu0 0
    %487 = vmatpush1.bf16.msra.mxu0 %v367
    %488 = vmatprep.subr.bf16.mxu0 0
    %489 = vmatpush1.bf16.msra.mxu0 %v366
    %490 = vmatprep.subr.bf16.mxu0 0
    %491 = vmatpush1.bf16.msra.mxu0 %v365
    %492 = vmatprep.subr.bf16.mxu0 0
    %493 = vmatpush1.bf16.msra.mxu0 %v364
    %494 = vmatprep.subr.bf16.mxu0 0
    %495 = vmatpush1.bf16.msra.mxu0 %v363
    %496 = vmatprep.subr.bf16.mxu0 0
    %497 = vmatpush1.bf16.msra.mxu0 %v362
    %498 = vmatprep.subr.bf16.mxu0 0
    %499 = vmatpush1.bf16.msra.mxu0 %v361
    %500 = vmatprep.subr.bf16.mxu0 0
    %501 = vmatpush1.bf16.msra.mxu0 %v360
    %502 = vmatprep.subr.bf16.mxu0 0
    %503 = vmatpush2.bf16.msra.mxu0 %v375
    %504 = vmatprep.subr.bf16.mxu0 0
    %505 = vmatpush2.bf16.msra.mxu0 %v374
    %506 = vmatprep.subr.bf16.mxu0 0
    %507 = vmatpush2.bf16.msra.mxu0 %v373
    %508 = vmatprep.subr.bf16.mxu0 0
    %509 = vmatpush2.bf16.msra.mxu0 %v372
    %510 = vmatprep.subr.bf16.mxu0 0
    %511 = vmatpush2.bf16.msra.mxu0 %v371
    %512 = vmatprep.subr.bf16.mxu0 0
    %513 = vmatpush2.bf16.msra.mxu0 %v370
    %514 = vmatprep.subr.bf16.mxu0 0
    %515 = vmatpush2.bf16.msra.mxu0 %v369
    %516 = vmatprep.subr.bf16.mxu0 0
    %517 = vmatpush2.bf16.msra.mxu0 %v368
    %518 = vmatprep.mubr.bf16.mxu0 %v39
    %519 = vmatmul.mubr.bf16.gmra.mxu0 %v38
    %v520 = vpop.f32.mrf.mxu0
    %v521 = vadd.f32 %v481, %v520
    %v522 = vpop.f32.mrf.mxu0
    %v523 = vpop.f32.mrf.mxu0
    %v524 = vpop.f32.mrf.mxu0
    %525 = vdwg.mxu0
    %526 = vmatprep.subr.bf16.mxu0 0
    %527 = vmatpush1.bf16.msra.mxu0 %v383
    %528 = vmatprep.subr.bf16.mxu0 0
    %529 = vmatpush1.bf16.msra.mxu0 %v382
    %530 = vmatprep.subr.bf16.mxu0 0
    %531 = vmatpush1.bf16.msra.mxu0 %v381
    %532 = vmatprep.subr.bf16.mxu0 0
    %533 = vmatpush1.bf16.msra.mxu0 %v380
    %534 = vmatprep.subr.bf16.mxu0 0
    %535 = vmatpush1.bf16.msra.mxu0 %v379
    %536 = vmatprep.subr.bf16.mxu0 0
    %537 = vmatpush1.bf16.msra.mxu0 %v378
    %538 = vmatprep.subr.bf16.mxu0 0
    %539 = vmatpush1.bf16.msra.mxu0 %v377
    %540 = vmatprep.subr.bf16.mxu0 0
    %541 = vmatpush1.bf16.msra.mxu0 %v376
    %542 = vmatprep.subr.bf16.mxu0 0
    %543 = vmatpush2.bf16.msra.mxu0 %v391
    %544 = vmatprep.subr.bf16.mxu0 0
    %545 = vmatpush2.bf16.msra.mxu0 %v390
    %546 = vmatprep.subr.bf16.mxu0 0
    %547 = vmatpush2.bf16.msra.mxu0 %v389
    %548 = vmatprep.subr.bf16.mxu0 0
    %549 = vmatpush2.bf16.msra.mxu0 %v388
    %550 = vmatprep.subr.bf16.mxu0 0
    %551 = vmatpush2.bf16.msra.mxu0 %v387
    %552 = vmatprep.subr.bf16.mxu0 0
    %553 = vmatpush2.bf16.msra.mxu0 %v386
    %554 = vmatprep.subr.bf16.mxu0 0
    %555 = vmatpush2.bf16.msra.mxu0 %v385
    %556 = vmatprep.subr.bf16.mxu0 0
    %557 = vmatpush2.bf16.msra.mxu0 %v384
    %558 = vmatprep.mubr.bf16.mxu0 %v41
    %559 = vmatmul.mubr.bf16.gmra.mxu0 %v40
    %v560 = vpop.f32.mrf.mxu0
    %v561 = vadd.f32 %v521, %v560
    %v562 = vpop.f32.mrf.mxu0
    %v563 = vpop.f32.mrf.mxu0
    %v564 = vpop.f32.mrf.mxu0
    %565 = vdwg.mxu0
    %566 = vmatprep.subr.bf16.mxu0 0
    %567 = vmatpush1.bf16.msra.mxu0 0
    %568 = vmatprep.subr.bf16.mxu0 0
    %569 = vmatpush1.bf16.msra.mxu0 0
    %570 = vmatprep.subr.bf16.mxu0 0
    %571 = vmatpush1.bf16.msra.mxu0 0
    %572 = vmatprep.subr.bf16.mxu0 0
    %573 = vmatpush1.bf16.msra.mxu0 0
    %574 = vmatprep.subr.bf16.mxu0 0
    %575 = vmatpush1.bf16.msra.mxu0 0
    %576 = vmatprep.subr.bf16.mxu0 0
    %577 = vmatpush1.bf16.msra.mxu0 0
    %578 = vmatprep.subr.bf16.mxu0 0
    %579 = vmatpush1.bf16.msra.mxu0 0
    %580 = vmatprep.subr.bf16.mxu0 0
    %581 = vmatpush1.bf16.msra.mxu0 %v392
    %582 = vmatprep.subr.bf16.mxu0 0
    %583 = vmatpush2.bf16.msra.mxu0 0
    %584 = vmatprep.subr.bf16.mxu0 0
    %585 = vmatpush2.bf16.msra.mxu0 0
    %586 = vmatprep.subr.bf16.mxu0 0
    %587 = vmatpush2.bf16.msra.mxu0 0
    %588 = vmatprep.subr.bf16.mxu0 0
    %589 = vmatpush2.bf16.msra.mxu0 0
    %590 = vmatprep.subr.bf16.mxu0 0
    %591 = vmatpush2.bf16.msra.mxu0 0
    %592 = vmatprep.subr.bf16.mxu0 0
    %593 = vmatpush2.bf16.msra.mxu0 0
    %594 = vmatprep.subr.bf16.mxu0 0
    %595 = vmatpush2.bf16.msra.mxu0 0
    %596 = vmatprep.subr.bf16.mxu0 0
    %597 = vmatpush2.bf16.msra.mxu0 0
    %598 = vmatprep.mubr.bf16.mxu0 0
    %599 = vmatmul.mubr.bf16.gmra.mxu0 %v444
    %v600 = vpop.f32.mrf.mxu0
    %v601 = vadd.f32 %v561, %v600
    %v602 = vpop.f32.mrf.mxu0
    %v603 = vpop.f32.mrf.mxu0
    %v604 = vpop.f32.mrf.mxu0
    %605 = vdwg.mxu0
    %606 = vst [vmem:[%s3] sm:$0xff] %v601
    // Predicated region
    $region18: #{mlp_forward.1} parent=1 // pred_check
      _
    $region19: #{mlp_forward.1} parent=1 // pred_check_branch
      %608 = sbr.rel (0) target = $region21
    $region20: #{mlp_forward.1} parent=1 // pred_region
      _
    $region21: #{mlp_forward.1} parent=1 // pred_fallthru
      _
    // Predicated region
    $region22: #{mlp_forward.1} parent=1 // pred_check
      _
    $region23: #{mlp_forward.1} parent=1 // pred_check_branch
      %610 = sbr.rel (0) target = $region25
    $region24: #{mlp_forward.1} parent=1 // pred_region
      _
    $region25: #{mlp_forward.1} parent=1 // pred_fallthru
      _
    %611 = vsyncpa [#allocation3], 1

</llo_original>
